<compile_context>
chip_gen: v7x
topology: tpu7x:2x2x1
jax: 0.10.0
libtpu: 0.0.40
codegen_flags: <defaults>
</compile_context>

<pallas_src>
import jax
import jax.numpy as jnp
from jax import lax
from jax.experimental import pallas as pl
from jax.experimental.pallas import tpu as pltpu

INPUT_SIZE = 28
SEQ_LEN = 28
HIDDEN = 64                 # H
NUM_CLASSES = 10
GATES = 3 * HIDDEN          # 192 per layer
HEAD_PAD = 128              # padded head width (lane-dense output)


def gru_linear_kernel(gi0_ref, w_bd_ref, w_ih1_ref, b_gh_ref, b_gi1_ref,
                      w_head_ref, b_head_ref, out_ref):
    T, B, G = gi0_ref.shape          # (28, TB, 192) — time-major, lane-dense
    H = HIDDEN

    def step(t, hcat):
        # One fused recurrent matmul: [h0|h1] (B,128) @ block-diag (128,384)
        # -> [gh0_r gh0_z gh0_n | gh1_r gh1_z gh1_n].  Weights are read from
        # VMEM refs inside the loop body (cheap vld, keeps vreg pressure low).
        gh = (jnp.dot(hcat, w_bd_ref[...], preferred_element_type=jnp.float32)
              + b_gh_ref[...])
        gi0 = gi0_ref[t]                                     # (B, 192)

        h0_prev = hcat[:, 0:H]
        h1_prev = hcat[:, H:2 * H]

        # Layer 0 cell (PyTorch gate order r, z, n; bhh0_n lives inside gh).
        r0 = jax.nn.sigmoid(gi0[:, 0:H] + gh[:, 0:H])
        z0 = jax.nn.sigmoid(gi0[:, H:2 * H] + gh[:, H:2 * H])
        n0 = jnp.tanh(gi0[:, 2 * H:3 * H] + r0 * gh[:, 2 * H:3 * H])
        h0 = (1.0 - z0) * n0 + z0 * h0_prev

        # Layer 1 input projection (second dependent matmul of the step).
        gi1 = (jnp.dot(h0, w_ih1_ref[...], preferred_element_type=jnp.float32)
               + b_gi1_ref[...])

        # Layer 1 cell (its gh came out of the fused matmul above).
        r1 = jax.nn.sigmoid(gi1[:, 0:H] + gh[:, 3 * H:4 * H])
        z1 = jax.nn.sigmoid(gi1[:, H:2 * H] + gh[:, 4 * H:5 * H])
        n1 = jnp.tanh(gi1[:, 2 * H:3 * H] + r1 * gh[:, 5 * H:6 * H])
        h1 = (1.0 - z1) * n1 + z1 * h1_prev

        return jnp.concatenate([h0, h1], axis=1)             # (B, 128)

    # fori_loop (bounded live ranges) with a manual unroll of 2 time steps per
    # iteration so the LLO scheduler can overlap the two dependent chains.
    def body2(i, hcat):
        t = 2 * i
        return step(t + 1, step(t, hcat))

    hcat = jnp.zeros((B, 2 * H), jnp.float32)
    hcat = lax.fori_loop(0, T // 2, body2, hcat)
    for t in range(2 * (T // 2), T):     # static remainder (empty for T=28)
        hcat = step(t, hcat)

    # Head: h1-selection + 10->128 padding are folded into w_head/b_head, so
    # this is a single lane-dense matmul and an unmasked full-vreg store.
    logits = (jnp.dot(hcat, w_head_ref[...], preferred_element_type=jnp.float32)
              + b_head_ref[...])
    out_ref[...] = logits.astype(out_ref.dtype)


def _prep_params(params):
    """Pack / transpose PyTorch-layout GRU params for the kernel."""
    H = HIDDEN
    G = GATES
    f32 = jnp.float32

    def comb_input_bias(bih, bhh):
        # r,z hidden biases folded into the input bias; n keeps only bih_n
        # (bhh_n must stay inside the r*(...) term).
        return jnp.concatenate([bih[0] + bhh[0], bih[1] + bhh[1], bih[2]])

    # Layer-0 input projection weight (used in XLA, not in the kernel).
    w_in0 = params["wih0"].T.astype(f32)                     # (28, 192)
    b_in0 = comb_input_bias(params["bih0"], params["bhh0"]).astype(f32)  # (192,)

    # Block-diagonal recurrent weight over hcat = [h0 | h1] (128 lanes):
    #   gh[:, 0:192]   = h0 @ whh0.T
    #   gh[:, 192:384] = h1 @ whh1.T
    w_bd = jnp.zeros((2 * H, 2 * G), f32)
    w_bd = w_bd.at[0:H, 0:G].set(params["whh0"].T)
    w_bd = w_bd.at[H:2 * H, G:2 * G].set(params["whh1"].T)

    w_ih1 = params["wih1"].T.astype(f32)                     # (64, 192)

    zH = jnp.zeros((H,), f32)
    b_gh = jnp.concatenate(
        [zH, zH, params["bhh0"][2], zH, zH, params["bhh1"][2]]
    ).reshape(1, 2 * G)                                      # (1, 384)
    b_gi1 = comb_input_bias(params["bih1"], params["bhh1"]).reshape(1, G)

    # Head: fold the h1-selection (rows 64:128 of hcat) and pad out to 128.
    w_head = jnp.zeros((2 * H, HEAD_PAD), f32)
    w_head = w_head.at[H:2 * H, 0:NUM_CLASSES].set(params["wl"].T)
    b_head = jnp.zeros((1, HEAD_PAD), f32)
    b_head = b_head.at[0, 0:NUM_CLASSES].set(params["bl"].reshape(-1))

    return w_in0, b_in0, w_bd, w_ih1, b_gh, b_gi1, w_head, b_head


def _ceil_div(a, b):
    return -(-a // b)


def _round_up(a, m):
    return _ceil_div(a, m) * m


def _num_tensorcores():
    # v7x has 2 TensorCores per chip; v5e/v6e have 1.  Heuristic, safe default 1.
    try:
        kind = jax.devices()[0].device_kind.lower()
        return 2 if "v7" in kind else 1
    except Exception:
        return 1


def recurrent_forward(x, params):
    B = x.shape[0]
    T, I, H, G = SEQ_LEN, INPUT_SIZE, HIDDEN, GATES

    w_in0, b_in0, w_bd, w_ih1, b_gh, b_gi1, w_head, b_head = _prep_params(params)

    # Hoisted layer-0 input projection (one big matmul in XLA), lane-dense 192.
    x3 = x.reshape(B, T, I).astype(jnp.float32)
    gi0 = jnp.einsum("bti,ig->btg", x3, w_in0) + b_in0       # (B, T, 192)
    gi0 = jnp.transpose(gi0, (1, 0, 2))                      # (T, B, 192)

    # Batch tiling: 1 block on single-TC chips (weights DMA'd once); >=2
    # "parallel" blocks on v7x so both TensorCores get work.
    Bp0 = max(8, _round_up(B, 8))
    n_tc = _num_tensorcores()
    if n_tc >= 2 and Bp0 >= 16:
        n_blk = max(n_tc, _ceil_div(Bp0, 128))
    else:
        n_blk = _ceil_div(Bp0, 128)
    TB = _round_up(_ceil_div(Bp0, n_blk), 8)
    Bp = TB * n_blk
    if Bp != B:
        gi0 = jnp.pad(gi0, ((0, 0), (0, Bp - B), (0, 0)))

    out = pl.pallas_call(
        gru_linear_kernel,
        out_shape=jax.ShapeDtypeStruct((Bp, HEAD_PAD), jnp.float32),
        grid_spec=pltpu.PrefetchScalarGridSpec(
            num_scalar_prefetch=0,
            grid=(n_blk,),
            in_specs=[
                pl.BlockSpec((T, TB, G), lambda b: (0, b, 0)),        # gi0
                pl.BlockSpec((2 * H, 2 * G), lambda b: (0, 0)),       # w_bd
                pl.BlockSpec((H, G), lambda b: (0, 0)),               # w_ih1
                pl.BlockSpec((1, 2 * G), lambda b: (0, 0)),           # b_gh
                pl.BlockSpec((1, G), lambda b: (0, 0)),               # b_gi1
                pl.BlockSpec((2 * H, HEAD_PAD), lambda b: (0, 0)),    # w_head
                pl.BlockSpec((1, HEAD_PAD), lambda b: (0, 0)),        # b_head
            ],
            out_specs=pl.BlockSpec((TB, HEAD_PAD), lambda b: (b, 0)),
        ),
        compiler_params=pltpu.CompilerParams(
            dimension_semantics=("parallel",),   # batch tiles -> 2 TCs on v7x
        ),
    )(gi0, w_bd, w_ih1, b_gh, b_gi1, w_head, b_head)

    return out[:B, :NUM_CLASSES]


def make_params(key):
    ks = jax.random.split(key, 11)
    s = 0.1
    return {
        # layer 0: input 28 -> hidden 64
        "wih0": s * jax.random.normal(ks[0], (3 * HIDDEN, INPUT_SIZE), jnp.float32),
        "whh0": s * jax.random.normal(ks[1], (3 * HIDDEN, HIDDEN), jnp.float32),
        "bih0": s * jax.random.normal(ks[2], (3, HIDDEN), jnp.float32),
        "bhh0": s * jax.random.normal(ks[3], (3, HIDDEN), jnp.float32),
        # layer 1: hidden 64 -> hidden 64
        "wih1": s * jax.random.normal(ks[4], (3 * HIDDEN, HIDDEN), jnp.float32),
        "whh1": s * jax.random.normal(ks[5], (3 * HIDDEN, HIDDEN), jnp.float32),
        "bih1": s * jax.random.normal(ks[6], (3, HIDDEN), jnp.float32),
        "bhh1": s * jax.random.normal(ks[7], (3, HIDDEN), jnp.float32),
        # classifier head
        "wl": s * jax.random.normal(ks[8], (NUM_CLASSES, HIDDEN), jnp.float32),
        "bl": s * jax.random.normal(ks[9], (1, NUM_CLASSES), jnp.float32),
    }


def reference_forward(x, params):
    """Pure-JAX reference with identical GRU semantics (PyTorch gate order)."""
    B = x.shape[0]
    xs = x.reshape(B, SEQ_LEN, INPUT_SIZE).astype(jnp.float32)
    H = HIDDEN

    def cell(h, x_t, wih, whh, bih, bhh):
        gi = x_t @ wih.T + bih.reshape(-1)
        gh = h @ whh.T + bhh.reshape(-1)
        r = jax.nn.sigmoid(gi[:, :H] + gh[:, :H])
        z = jax.nn.sigmoid(gi[:, H:2 * H] + gh[:, H:2 * H])
        n = jnp.tanh(gi[:, 2 * H:] + r * gh[:, 2 * H:])
        return (1.0 - z) * n + z * h

    h0 = jnp.zeros((B, H), jnp.float32)
    h1 = jnp.zeros((B, H), jnp.float32)
    for t in range(SEQ_LEN):
        h0 = cell(h0, xs[:, t, :], params["wih0"], params["whh0"],
                  params["bih0"], params["bhh0"])
        h1 = cell(h1, h0, params["wih1"], params["whh1"],
                  params["bih1"], params["bhh1"])
    return h1 @ params["wl"].T + params["bl"]


if __name__ == "__main__":
    key = jax.random.PRNGKey(0)
    kx, kp = jax.random.split(key)

    # NCHW MNIST-like input, small batch.
    x = jax.random.normal(kx, (2, 1, 28, 28), jnp.float32)
    params = make_params(kp)

    out = recurrent_forward(x, params)
    out = jax.block_until_ready(out)

    ref = reference_forward(x, params)
    assert out.shape == (2, NUM_CLASSES)
    assert jnp.allclose(out, ref, rtol=1e-4, atol=1e-4), "mismatch vs JAX reference"

    print("KERNEL_OK")
</pallas_src>

<mosaic_0001>
module attributes {stable_mosaic.version = 11 : i64} {
  func.func @gru_linear_kernel(%arg0: i32, %arg1: memref<28x8x192xf32, #tpu.memory_space<vmem>>, %arg2: memref<128x384xf32, #tpu.memory_space<vmem>>, %arg3: memref<64x192xf32, #tpu.memory_space<vmem>>, %arg4: memref<1x384xf32, #tpu.memory_space<vmem>>, %arg5: memref<1x192xf32, #tpu.memory_space<vmem>>, %arg6: memref<128x128xf32, #tpu.memory_space<vmem>>, %arg7: memref<1x128xf32, #tpu.memory_space<vmem>>, %arg8: memref<8x128xf32, #tpu.memory_space<vmem>>) attributes {dimension_semantics = [#tpu.dimension_semantics<parallel>], iteration_bounds = array<i64: 1>, scalar_prefetch = 0 : i64, scratch_operands = 0 : i64, tpu.core_type = #tpu.core_type<tc>, window_params = [{transform_indices = @transform_0, window_bounds = array<i64: 28, 8, 192>}, {pipeline_mode = #tpu.pipeline_mode<synchronous>, transform_indices = @transform_1, window_bounds = array<i64: 128, 384>}, {pipeline_mode = #tpu.pipeline_mode<synchronous>, transform_indices = @transform_2, window_bounds = array<i64: 64, 192>}, {pipeline_mode = #tpu.pipeline_mode<synchronous>, transform_indices = @transform_3, window_bounds = array<i64: 1, 384>}, {pipeline_mode = #tpu.pipeline_mode<synchronous>, transform_indices = @transform_4, window_bounds = array<i64: 1, 192>}, {pipeline_mode = #tpu.pipeline_mode<synchronous>, transform_indices = @transform_5, window_bounds = array<i64: 128, 128>}, {pipeline_mode = #tpu.pipeline_mode<synchronous>, transform_indices = @transform_6, window_bounds = array<i64: 1, 128>}, {transform_indices = @transform_7, window_bounds = array<i64: 8, 128>}]} {
    %cst = arith.constant 0.000000e+00 : f32
    %0 = vector.broadcast %cst : f32 to vector<8x128xf32>
    %c0_i32 = arith.constant 0 : i32
    %c14_i32 = arith.constant 14 : i32
    %1 = arith.addi %c0_i32, %c14_i32 : i32
    %c1_i32 = arith.constant 1 : i32
    %2 = scf.for %arg9 = %c0_i32 to %1 step %c1_i32 iter_args(%arg10 = %0) -> (vector<8x128xf32>)  : i32 {
      %c2_i32 = arith.constant 2 : i32
      %9 = arith.muli %c2_i32, %arg9 : i32
      %c1_i32_7 = arith.constant 1 : i32
      %10 = arith.addi %9, %c1_i32_7 : i32
      %c0_8 = arith.constant 0 : index
      %c0_9 = arith.constant 0 : index
      %11 = vector.load %arg2[%c0_8, %c0_9] : memref<128x384xf32, #tpu.memory_space<vmem>>, vector<128x384xf32>
      %cst_10 = arith.constant dense<0.000000e+00> : vector<8x384xf32>
      %12 = tpu.matmul %arg10, %11, %cst_10 {dimension_numbers = #tpu.dot_dimension_numbers<[1], [0], [0], [1], [0, 0, 1, 1], [], []>} : vector<8x128xf32>, vector<128x384xf32>, vector<8x384xf32> -> vector<8x384xf32>
      %c0_11 = arith.constant 0 : index
      %c0_12 = arith.constant 0 : index
      %13 = vector.load %arg4[%c0_11, %c0_12] : memref<1x384xf32, #tpu.memory_space<vmem>>, vector<1x384xf32>
      %14 = vector.broadcast %13 : vector<1x384xf32> to vector<8x384xf32>
      %15 = arith.addf %12, %14 : vector<8x384xf32>
      %16 = arith.index_cast %9 : i32 to index
      %c0_13 = arith.constant 0 : index
      %c0_14 = arith.constant 0 : index
      %17 = vector.load %arg1[%16, %c0_13, %c0_14] : memref<28x8x192xf32, #tpu.memory_space<vmem>>, vector<1x8x192xf32>
      %18 = vector.shape_cast %17 : vector<1x8x192xf32> to vector<8x192xf32>
      %19 = vector.extract_strided_slice %arg10 {offsets = [0, 0], sizes = [8, 64], strides = [1, 1]} : vector<8x128xf32> to vector<8x64xf32>
      %20 = vector.extract_strided_slice %arg10 {offsets = [0, 64], sizes = [8, 64], strides = [1, 1]} : vector<8x128xf32> to vector<8x64xf32>
      %21 = vector.extract_strided_slice %18 {offsets = [0, 0], sizes = [8, 64], strides = [1, 1]} : vector<8x192xf32> to vector<8x64xf32>
      %22 = vector.extract_strided_slice %15 {offsets = [0, 0], sizes = [8, 64], strides = [1, 1]} : vector<8x384xf32> to vector<8x64xf32>
      %23 = arith.addf %21, %22 : vector<8x64xf32>
      %24 = arith.negf %23 : vector<8x64xf32>
      %25 = math.exp %24 : vector<8x64xf32>
      %cst_15 = arith.constant 1.000000e+00 : f32
      %26 = vector.broadcast %cst_15 : f32 to vector<8x64xf32>
      %27 = arith.addf %26, %25 : vector<8x64xf32>
      %28 = arith.divf %26, %27 : vector<8x64xf32>
      %29 = vector.extract_strided_slice %18 {offsets = [0, 64], sizes = [8, 64], strides = [1, 1]} : vector<8x192xf32> to vector<8x64xf32>
      %30 = vector.extract_strided_slice %15 {offsets = [0, 64], sizes = [8, 64], strides = [1, 1]} : vector<8x384xf32> to vector<8x64xf32>
      %31 = arith.addf %29, %30 : vector<8x64xf32>
      %32 = arith.negf %31 : vector<8x64xf32>
      %33 = math.exp %32 : vector<8x64xf32>
      %cst_16 = arith.constant 1.000000e+00 : f32
      %34 = vector.broadcast %cst_16 : f32 to vector<8x64xf32>
      %35 = arith.addf %34, %33 : vector<8x64xf32>
      %36 = arith.divf %34, %35 : vector<8x64xf32>
      %37 = vector.extract_strided_slice %18 {offsets = [0, 128], sizes = [8, 64], strides = [1, 1]} : vector<8x192xf32> to vector<8x64xf32>
      %38 = vector.extract_strided_slice %15 {offsets = [0, 128], sizes = [8, 64], strides = [1, 1]} : vector<8x384xf32> to vector<8x64xf32>
      %39 = arith.mulf %28, %38 : vector<8x64xf32>
      %40 = arith.addf %37, %39 : vector<8x64xf32>
      %41 = math.tanh %40 : vector<8x64xf32>
      %cst_17 = arith.constant 1.000000e+00 : f32
      %42 = vector.broadcast %cst_17 : f32 to vector<8x64xf32>
      %43 = arith.subf %42, %36 : vector<8x64xf32>
      %44 = arith.mulf %43, %41 : vector<8x64xf32>
      %45 = arith.mulf %36, %19 : vector<8x64xf32>
      %46 = arith.addf %44, %45 : vector<8x64xf32>
      %c0_18 = arith.constant 0 : index
      %c0_19 = arith.constant 0 : index
      %47 = vector.load %arg3[%c0_18, %c0_19] : memref<64x192xf32, #tpu.memory_space<vmem>>, vector<64x192xf32>
      %cst_20 = arith.constant dense<0.000000e+00> : vector<8x192xf32>
      %48 = tpu.matmul %46, %47, %cst_20 {dimension_numbers = #tpu.dot_dimension_numbers<[1], [0], [0], [1], [0, 0, 1, 1], [], []>} : vector<8x64xf32>, vector<64x192xf32>, vector<8x192xf32> -> vector<8x192xf32>
      %c0_21 = arith.constant 0 : index
      %c0_22 = arith.constant 0 : index
      %49 = vector.load %arg5[%c0_21, %c0_22] : memref<1x192xf32, #tpu.memory_space<vmem>>, vector<1x192xf32>
      %50 = vector.broadcast %49 : vector<1x192xf32> to vector<8x192xf32>
      %51 = arith.addf %48, %50 : vector<8x192xf32>
      %52 = vector.extract_strided_slice %51 {offsets = [0, 0], sizes = [8, 64], strides = [1, 1]} : vector<8x192xf32> to vector<8x64xf32>
      %53 = vector.extract_strided_slice %15 {offsets = [0, 192], sizes = [8, 64], strides = [1, 1]} : vector<8x384xf32> to vector<8x64xf32>
      %54 = arith.addf %52, %53 : vector<8x64xf32>
      %55 = arith.negf %54 : vector<8x64xf32>
      %56 = math.exp %55 : vector<8x64xf32>
      %cst_23 = arith.constant 1.000000e+00 : f32
      %57 = vector.broadcast %cst_23 : f32 to vector<8x64xf32>
      %58 = arith.addf %57, %56 : vector<8x64xf32>
      %59 = arith.divf %57, %58 : vector<8x64xf32>
      %60 = vector.extract_strided_slice %51 {offsets = [0, 64], sizes = [8, 64], strides = [1, 1]} : vector<8x192xf32> to vector<8x64xf32>
      %61 = vector.extract_strided_slice %15 {offsets = [0, 256], sizes = [8, 64], strides = [1, 1]} : vector<8x384xf32> to vector<8x64xf32>
      %62 = arith.addf %60, %61 : vector<8x64xf32>
      %63 = arith.negf %62 : vector<8x64xf32>
      %64 = math.exp %63 : vector<8x64xf32>
      %cst_24 = arith.constant 1.000000e+00 : f32
      %65 = vector.broadcast %cst_24 : f32 to vector<8x64xf32>
      %66 = arith.addf %65, %64 : vector<8x64xf32>
      %67 = arith.divf %65, %66 : vector<8x64xf32>
      %68 = vector.extract_strided_slice %51 {offsets = [0, 128], sizes = [8, 64], strides = [1, 1]} : vector<8x192xf32> to vector<8x64xf32>
      %69 = vector.extract_strided_slice %15 {offsets = [0, 320], sizes = [8, 64], strides = [1, 1]} : vector<8x384xf32> to vector<8x64xf32>
      %70 = arith.mulf %59, %69 : vector<8x64xf32>
      %71 = arith.addf %68, %70 : vector<8x64xf32>
      %72 = math.tanh %71 : vector<8x64xf32>
      %cst_25 = arith.constant 1.000000e+00 : f32
      %73 = vector.broadcast %cst_25 : f32 to vector<8x64xf32>
      %74 = arith.subf %73, %67 : vector<8x64xf32>
      %75 = arith.mulf %74, %72 : vector<8x64xf32>
      %76 = arith.mulf %67, %20 : vector<8x64xf32>
      %77 = arith.addf %75, %76 : vector<8x64xf32>
      %78 = tpu.concatenate %46, %77 in 1 : vector<8x64xf32>, vector<8x64xf32> -> vector<8x128xf32>
      %c0_26 = arith.constant 0 : index
      %c0_27 = arith.constant 0 : index
      %79 = vector.load %arg2[%c0_26, %c0_27] : memref<128x384xf32, #tpu.memory_space<vmem>>, vector<128x384xf32>
      %cst_28 = arith.constant dense<0.000000e+00> : vector<8x384xf32>
      %80 = tpu.matmul %78, %79, %cst_28 {dimension_numbers = #tpu.dot_dimension_numbers<[1], [0], [0], [1], [0, 0, 1, 1], [], []>} : vector<8x128xf32>, vector<128x384xf32>, vector<8x384xf32> -> vector<8x384xf32>
      %c0_29 = arith.constant 0 : index
      %c0_30 = arith.constant 0 : index
      %81 = vector.load %arg4[%c0_29, %c0_30] : memref<1x384xf32, #tpu.memory_space<vmem>>, vector<1x384xf32>
      %82 = vector.broadcast %81 : vector<1x384xf32> to vector<8x384xf32>
      %83 = arith.addf %80, %82 : vector<8x384xf32>
      %84 = arith.index_cast %10 : i32 to index
      %c0_31 = arith.constant 0 : index
      %c0_32 = arith.constant 0 : index
      %85 = vector.load %arg1[%84, %c0_31, %c0_32] : memref<28x8x192xf32, #tpu.memory_space<vmem>>, vector<1x8x192xf32>
      %86 = vector.shape_cast %85 : vector<1x8x192xf32> to vector<8x192xf32>
      %87 = vector.extract_strided_slice %78 {offsets = [0, 0], sizes = [8, 64], strides = [1, 1]} : vector<8x128xf32> to vector<8x64xf32>
      %88 = vector.extract_strided_slice %78 {offsets = [0, 64], sizes = [8, 64], strides = [1, 1]} : vector<8x128xf32> to vector<8x64xf32>
      %89 = vector.extract_strided_slice %86 {offsets = [0, 0], sizes = [8, 64], strides = [1, 1]} : vector<8x192xf32> to vector<8x64xf32>
      %90 = vector.extract_strided_slice %83 {offsets = [0, 0], sizes = [8, 64], strides = [1, 1]} : vector<8x384xf32> to vector<8x64xf32>
      %91 = arith.addf %89, %90 : vector<8x64xf32>
      %92 = arith.negf %91 : vector<8x64xf32>
      %93 = math.exp %92 : vector<8x64xf32>
      %cst_33 = arith.constant 1.000000e+00 : f32
      %94 = vector.broadcast %cst_33 : f32 to vector<8x64xf32>
      %95 = arith.addf %94, %93 : vector<8x64xf32>
      %96 = arith.divf %94, %95 : vector<8x64xf32>
      %97 = vector.extract_strided_slice %86 {offsets = [0, 64], sizes = [8, 64], strides = [1, 1]} : vector<8x192xf32> to vector<8x64xf32>
      %98 = vector.extract_strided_slice %83 {offsets = [0, 64], sizes = [8, 64], strides = [1, 1]} : vector<8x384xf32> to vector<8x64xf32>
      %99 = arith.addf %97, %98 : vector<8x64xf32>
      %100 = arith.negf %99 : vector<8x64xf32>
      %101 = math.exp %100 : vector<8x64xf32>
      %cst_34 = arith.constant 1.000000e+00 : f32
      %102 = vector.broadcast %cst_34 : f32 to vector<8x64xf32>
      %103 = arith.addf %102, %101 : vector<8x64xf32>
      %104 = arith.divf %102, %103 : vector<8x64xf32>
      %105 = vector.extract_strided_slice %86 {offsets = [0, 128], sizes = [8, 64], strides = [1, 1]} : vector<8x192xf32> to vector<8x64xf32>
      %106 = vector.extract_strided_slice %83 {offsets = [0, 128], sizes = [8, 64], strides = [1, 1]} : vector<8x384xf32> to vector<8x64xf32>
      %107 = arith.mulf %96, %106 : vector<8x64xf32>
      %108 = arith.addf %105, %107 : vector<8x64xf32>
      %109 = math.tanh %108 : vector<8x64xf32>
      %cst_35 = arith.constant 1.000000e+00 : f32
      %110 = vector.broadcast %cst_35 : f32 to vector<8x64xf32>
      %111 = arith.subf %110, %104 : vector<8x64xf32>
      %112 = arith.mulf %111, %109 : vector<8x64xf32>
      %113 = arith.mulf %104, %87 : vector<8x64xf32>
      %114 = arith.addf %112, %113 : vector<8x64xf32>
      %c0_36 = arith.constant 0 : index
      %c0_37 = arith.constant 0 : index
      %115 = vector.load %arg3[%c0_36, %c0_37] : memref<64x192xf32, #tpu.memory_space<vmem>>, vector<64x192xf32>
      %cst_38 = arith.constant dense<0.000000e+00> : vector<8x192xf32>
      %116 = tpu.matmul %114, %115, %cst_38 {dimension_numbers = #tpu.dot_dimension_numbers<[1], [0], [0], [1], [0, 0, 1, 1], [], []>} : vector<8x64xf32>, vector<64x192xf32>, vector<8x192xf32> -> vector<8x192xf32>
      %c0_39 = arith.constant 0 : index
      %c0_40 = arith.constant 0 : index
      %117 = vector.load %arg5[%c0_39, %c0_40] : memref<1x192xf32, #tpu.memory_space<vmem>>, vector<1x192xf32>
      %118 = vector.broadcast %117 : vector<1x192xf32> to vector<8x192xf32>
      %119 = arith.addf %116, %118 : vector<8x192xf32>
      %120 = vector.extract_strided_slice %119 {offsets = [0, 0], sizes = [8, 64], strides = [1, 1]} : vector<8x192xf32> to vector<8x64xf32>
      %121 = vector.extract_strided_slice %83 {offsets = [0, 192], sizes = [8, 64], strides = [1, 1]} : vector<8x384xf32> to vector<8x64xf32>
      %122 = arith.addf %120, %121 : vector<8x64xf32>
      %123 = arith.negf %122 : vector<8x64xf32>
      %124 = math.exp %123 : vector<8x64xf32>
      %cst_41 = arith.constant 1.000000e+00 : f32
      %125 = vector.broadcast %cst_41 : f32 to vector<8x64xf32>
      %126 = arith.addf %125, %124 : vector<8x64xf32>
      %127 = arith.divf %125, %126 : vector<8x64xf32>
      %128 = vector.extract_strided_slice %119 {offsets = [0, 64], sizes = [8, 64], strides = [1, 1]} : vector<8x192xf32> to vector<8x64xf32>
      %129 = vector.extract_strided_slice %83 {offsets = [0, 256], sizes = [8, 64], strides = [1, 1]} : vector<8x384xf32> to vector<8x64xf32>
      %130 = arith.addf %128, %129 : vector<8x64xf32>
      %131 = arith.negf %130 : vector<8x64xf32>
      %132 = math.exp %131 : vector<8x64xf32>
      %cst_42 = arith.constant 1.000000e+00 : f32
      %133 = vector.broadcast %cst_42 : f32 to vector<8x64xf32>
      %134 = arith.addf %133, %132 : vector<8x64xf32>
      %135 = arith.divf %133, %134 : vector<8x64xf32>
      %136 = vector.extract_strided_slice %119 {offsets = [0, 128], sizes = [8, 64], strides = [1, 1]} : vector<8x192xf32> to vector<8x64xf32>
      %137 = vector.extract_strided_slice %83 {offsets = [0, 320], sizes = [8, 64], strides = [1, 1]} : vector<8x384xf32> to vector<8x64xf32>
      %138 = arith.mulf %127, %137 : vector<8x64xf32>
      %139 = arith.addf %136, %138 : vector<8x64xf32>
      %140 = math.tanh %139 : vector<8x64xf32>
      %cst_43 = arith.constant 1.000000e+00 : f32
      %141 = vector.broadcast %cst_43 : f32 to vector<8x64xf32>
      %142 = arith.subf %141, %135 : vector<8x64xf32>
      %143 = arith.mulf %142, %140 : vector<8x64xf32>
      %144 = arith.mulf %135, %88 : vector<8x64xf32>
      %145 = arith.addf %143, %144 : vector<8x64xf32>
      %146 = tpu.concatenate %114, %145 in 1 : vector<8x64xf32>, vector<8x64xf32> -> vector<8x128xf32>
      scf.yield %146 : vector<8x128xf32>
    }
    %c14_i32_0 = arith.constant 14 : i32
    %c0 = arith.constant 0 : index
    %c0_1 = arith.constant 0 : index
    %3 = vector.load %arg6[%c0, %c0_1] : memref<128x128xf32, #tpu.memory_space<vmem>>, vector<128x128xf32>
    %cst_2 = arith.constant dense<0.000000e+00> : vector<8x128xf32>
    %4 = tpu.matmul %2, %3, %cst_2 {dimension_numbers = #tpu.dot_dimension_numbers<[1], [0], [0], [1], [0, 0, 1, 1], [], []>} : vector<8x128xf32>, vector<128x128xf32>, vector<8x128xf32> -> vector<8x128xf32>
    %c0_3 = arith.constant 0 : index
    %c0_4 = arith.constant 0 : index
    %5 = vector.load %arg7[%c0_3, %c0_4] : memref<1x128xf32, #tpu.memory_space<vmem>>, vector<1x128xf32>
    %6 = vector.broadcast %5 : vector<1x128xf32> to vector<8x128xf32>
    %7 = arith.addf %4, %6 : vector<8x128xf32>
    %c0_5 = arith.constant 0 : index
    %c0_6 = arith.constant 0 : index
    %8 = vector.load %arg8[%c0_5, %c0_6] : memref<8x128xf32, #tpu.memory_space<vmem>>, vector<8x128xf32>
    tpu.vector_store %arg8[%c0_5, %c0_6], %7 {strides = array<i32>} : memref<8x128xf32, #tpu.memory_space<vmem>>, vector<8x128xf32>,
    return
  }
  func.func @transform_0(%arg0: i32) -> (i32, i32, i32) {
    %c0_i32 = arith.constant 0 : i32
    %c0_i32_0 = arith.constant 0 : i32
    %c0_i32_1 = arith.constant 0 : i32
    return %c0_i32, %arg0, %c0_i32_0 : i32, i32, i32
  }
  func.func @transform_1(%arg0: i32) -> (i32, i32) {
    %c0_i32 = arith.constant 0 : i32
    %c0_i32_0 = arith.constant 0 : i32
    %c0_i32_1 = arith.constant 0 : i32
    return %c0_i32, %c0_i32_0 : i32, i32
  }
  func.func @transform_2(%arg0: i32) -> (i32, i32) {
    %c0_i32 = arith.constant 0 : i32
    %c0_i32_0 = arith.constant 0 : i32
    %c0_i32_1 = arith.constant 0 : i32
    return %c0_i32, %c0_i32_0 : i32, i32
  }
  func.func @transform_3(%arg0: i32) -> (i32, i32) {
    %c0_i32 = arith.constant 0 : i32
    %c0_i32_0 = arith.constant 0 : i32
    %c0_i32_1 = arith.constant 0 : i32
    return %c0_i32, %c0_i32_0 : i32, i32
  }
  func.func @transform_4(%arg0: i32) -> (i32, i32) {
    %c0_i32 = arith.constant 0 : i32
    %c0_i32_0 = arith.constant 0 : i32
    %c0_i32_1 = arith.constant 0 : i32
    return %c0_i32, %c0_i32_0 : i32, i32
  }
  func.func @transform_5(%arg0: i32) -> (i32, i32) {
    %c0_i32 = arith.constant 0 : i32
    %c0_i32_0 = arith.constant 0 : i32
    %c0_i32_1 = arith.constant 0 : i32
    return %c0_i32, %c0_i32_0 : i32, i32
  }
  func.func @transform_6(%arg0: i32) -> (i32, i32) {
    %c0_i32 = arith.constant 0 : i32
    %c0_i32_0 = arith.constant 0 : i32
    %c0_i32_1 = arith.constant 0 : i32
    return %c0_i32, %c0_i32_0 : i32, i32
  }
  func.func @transform_7(%arg0: i32) -> (i32, i32) {
    %c0_i32 = arith.constant 0 : i32
    %c0_i32_0 = arith.constant 0 : i32
    return %arg0, %c0_i32 : i32, i32
  }
}

</mosaic_0001>

<llo_original>
// kernel: tpu_custom_call.1
$region0: #{tpu_custom_call.1}
  #allocation0 [shape = 'u32[]', space=smem, size = 0x4, offset = 0x4, fixed_abs, tag = 'smem constant byte address 0x4 - core index']
  #allocation1 [shape = 'u32[144,128]{1,0:T(1,128)}', space=vmem, size = 0x12000, scoped, tag = 'internal scratch']
  %s0 = inlined_call_operand.hbm [shape: f32[28,8,192], index: 0, kind: input, shape index: {}]
  %s1 = inlined_call_operand.hbm [shape: f32[128,384], index: 1, kind: input, shape index: {}]
  %s2 = inlined_call_operand.hbm [shape: f32[64,192], index: 2, kind: input, shape index: {}]
  %s3 = inlined_call_operand.vmem [shape: f32[1,384], index: 3, kind: input, shape index: {}]
  %s4 = inlined_call_operand.vmem [shape: f32[1,192], index: 4, kind: input, shape index: {}]
  %s5 = inlined_call_operand.hbm [shape: f32[128,128], index: 5, kind: input, shape index: {}]
  %s6 = inlined_call_operand.vmem [shape: f32[1,128], index: 6, kind: input, shape index: {}]
  %s7 = inlined_call_operand.hbm [shape: f32[8,128], index: 7, kind: output, shape index: {}]
  %s8 = sld [smem:[#allocation0]]
  $region61: #{tpu_custom_call.1} parent=0
    _
  %s10 = ssub.s32 1, %s8
  %s11 = scalar_select 0, %s10, %s8
  $region1: #{tpu_custom_call.1} parent=0
    #allocation2 [shape = 'u8[229376]{0}', space=vmem, size = 0x38000, scoped, tag = 'input window, operand 0, single buffered']
    #allocation3 [shape = 's32[1]{0}', space=sflag, size = 0x4, scoped, tag = 'scoped memory for tpu_custom_call.1']
    #allocation4 [shape = 's32[1]{0}', space=sflag, size = 0x4, scoped, tag = 'scoped memory for tpu_custom_call.1']
    #allocation5 [shape = 'u8[196608]{0}', space=vmem, size = 0x30000, scoped, tag = 'input window, operand 1, single buffered']
    #allocation6 [shape = 's32[1]{0}', space=sflag, size = 0x4, scoped, tag = 'scoped memory for tpu_custom_call.1']
    #allocation7 [shape = 'u8[65536]{0}', space=vmem, size = 0x10000, scoped, tag = 'input window, operand 2, single buffered']
    #allocation8 [shape = 'u8[65536]{0}', space=vmem, size = 0x10000, scoped, tag = 'input window, operand 5, single buffered']
    #allocation9 [shape = 's32[1]{0}', space=sflag, size = 0x4, scoped, tag = 'scoped memory for tpu_custom_call.1']
    #allocation10 [shape = 'u8[4096]{0}', space=vmem, size = 0x1000, scoped, tag = 'output window, operand 0, single buffered']
    %12 = vsyncpa [#allocation3], 0
    %13 = vsyncpa [#allocation6], 0
    %14 = vsyncpa [#allocation9], 0
    %15 = vsyncpa [#allocation4], 0
    // Predicated region
    $region2: #{tpu_custom_call.1} parent=1 // pred_check
      _
    $region3: #{tpu_custom_call.1} parent=1 // pred_check_branch
      %17 = sbr.rel (0) target = $region5
    $region4: #{tpu_custom_call.1} parent=1 // pred_region
      %s19 = ssub.s32 7168, 7168
      %20 = vsyncadd [#allocation3], %s19
      %s21 = sshll.u32 [#allocation2], 4
      %s22 = int_to_ptr.vmem [resolvable:$true] %s21
      %27 = dma.hbm_to_vmem [thread:$0]  %s0, 7168, %s22, [#allocation3], 256, 256, 16
    $region5: #{tpu_custom_call.1} parent=1 // pred_fallthru
      _
    // Predicated region
    $region6: #{tpu_custom_call.1} parent=1 // pred_check
      _
    $region7: #{tpu_custom_call.1} parent=1 // pred_check_branch
      %29 = sbr.rel (0) target = $region9
    $region8: #{tpu_custom_call.1} parent=1 // pred_region
      %s31 = ssub.s32 6144, 6144
      %32 = vsyncadd [#allocation6], %s31
      %s33 = sshll.u32 [#allocation5], 4
      %s34 = int_to_ptr.vmem [resolvable:$true] %s33
      %39 = dma.hbm_to_vmem [thread:$0]  %s1, 6144, %s34, [#allocation6], 384, 384, 24
    $region9: #{tpu_custom_call.1} parent=1 // pred_fallthru
      _
    // Predicated region
    $region10: #{tpu_custom_call.1} parent=1 // pred_check
      _
    $region11: #{tpu_custom_call.1} parent=1 // pred_check_branch
      %41 = sbr.rel (0) target = $region13
    $region12: #{tpu_custom_call.1} parent=1 // pred_region
      %s43 = ssub.s32 2048, 2048
      %44 = vsyncadd [#allocation6], %s43
      %s45 = sshll.u32 [#allocation7], 4
      %s46 = int_to_ptr.vmem [resolvable:$true] %s45
      %51 = dma.hbm_to_vmem [thread:$0]  %s2, 2048, %s46, [#allocation6], 256, 256, 16
    $region13: #{tpu_custom_call.1} parent=1 // pred_fallthru
      _
    // Predicated region
    $region14: #{tpu_custom_call.1} parent=1 // pred_check
      _
    $region15: #{tpu_custom_call.1} parent=1 // pred_check_branch
      %53 = sbr.rel (0) target = $region17
    $region16: #{tpu_custom_call.1} parent=1 // pred_region
      _
    $region17: #{tpu_custom_call.1} parent=1 // pred_fallthru
      _
    // Predicated region
    $region18: #{tpu_custom_call.1} parent=1 // pred_check
      _
    $region19: #{tpu_custom_call.1} parent=1 // pred_check_branch
      %55 = sbr.rel (0) target = $region21
    $region20: #{tpu_custom_call.1} parent=1 // pred_region
      _
    $region21: #{tpu_custom_call.1} parent=1 // pred_fallthru
      _
    // Predicated region
    $region22: #{tpu_custom_call.1} parent=1 // pred_check
      _
    $region23: #{tpu_custom_call.1} parent=1 // pred_check_branch
      %57 = sbr.rel (0) target = $region25
    $region24: #{tpu_custom_call.1} parent=1 // pred_region
      %s59 = ssub.s32 2048, 2048
      %60 = vsyncadd [#allocation9], %s59
      %s61 = sshll.u32 [#allocation8], 4
      %s62 = int_to_ptr.vmem [resolvable:$true] %s61
      %67 = dma.hbm_to_vmem [thread:$0]  %s5, 2048, %s62, [#allocation9], 128, 128, 8
    $region25: #{tpu_custom_call.1} parent=1 // pred_fallthru
      _
    // Predicated region
    $region26: #{tpu_custom_call.1} parent=1 // pred_check
      _
    $region27: #{tpu_custom_call.1} parent=1 // pred_check_branch
      %69 = sbr.rel (0) target = $region29
    $region28: #{tpu_custom_call.1} parent=1 // pred_region
      _
    $region29: #{tpu_custom_call.1} parent=1 // pred_fallthru
      _
    // Predicated region
    $region30: #{tpu_custom_call.1} parent=1 // pred_check
      _
    $region31: #{tpu_custom_call.1} parent=1 // pred_check_branch
      %71 = sbr.rel (0) target = $region33
    $region32: #{tpu_custom_call.1} parent=1 // pred_region
      %72 = dma.done [#allocation3], 7168
    $region33: #{tpu_custom_call.1} parent=1 // pred_fallthru
      _
    // Predicated region
    $region34: #{tpu_custom_call.1} parent=1 // pred_check
      _
    $region35: #{tpu_custom_call.1} parent=1 // pred_check_branch
      %74 = sbr.rel (0) target = $region37
    $region36: #{tpu_custom_call.1} parent=1 // pred_region
      %75 = dma.done [#allocation6], 6144
    $region37: #{tpu_custom_call.1} parent=1 // pred_fallthru
      _
    // Predicated region
    $region38: #{tpu_custom_call.1} parent=1 // pred_check
      _
    $region39: #{tpu_custom_call.1} parent=1 // pred_check_branch
      %77 = sbr.rel (0) target = $region41
    $region40: #{tpu_custom_call.1} parent=1 // pred_region
      %78 = dma.done [#allocation6], 2048
    $region41: #{tpu_custom_call.1} parent=1 // pred_fallthru
      _
    // Predicated region
    $region42: #{tpu_custom_call.1} parent=1 // pred_check
      _
    $region43: #{tpu_custom_call.1} parent=1 // pred_check_branch
      %80 = sbr.rel (0) target = $region45
    $region44: #{tpu_custom_call.1} parent=1 // pred_region
      %81 = dma.done [#allocation9], 2048
    $region45: #{tpu_custom_call.1} parent=1 // pred_fallthru
      _
    loop: start=0, step=1, limit=14
    $region46: #{tpu_custom_call.1} parent=1 // loop_pre_header
      _
    $region47: #{tpu_custom_call.1} parent=1 // loop_header
      %s83 = sphi 0, %s87
      %p84 = scmp.ge.s32.totalorder %s83, 14
      %v88 = vphi 0.0, %v742
    $region48: #{tpu_custom_call.1} parent=1 // loop_header_branch
      %86 = sbr.rel (%p84) target = $region52
    $region49: #{tpu_custom_call.1} parent=1 // loop_body
      %s89 = smul.u32 %s83, 2
      %s90 = sadd.s32 %s89, 1
      %v91 = vld [vmem:[#allocation5] sm:$0xff]
      %v92 = vld [vmem:[#allocation5 + $0x8] sm:$0xff]
      %v93 = vld [vmem:[#allocation5 + $0x10] sm:$0xff]
      %v94 = vld [vmem:[#allocation5 + $0x18] sm:$0xff]
      %v95 = vld [vmem:[#allocation5 + $0x20] sm:$0xff]
      %v96 = vld [vmem:[#allocation5 + $0x28] sm:$0xff]
      %v97 = vld [vmem:[#allocation5 + $0x30] sm:$0xff]
      %v98 = vld [vmem:[#allocation5 + $0x38] sm:$0xff]
      %v99 = vld [vmem:[#allocation5 + $0x40] sm:$0xff]
      %v100 = vld [vmem:[#allocation5 + $0x48] sm:$0xff]
      %v101 = vld [vmem:[#allocation5 + $0x50] sm:$0xff]
      %v102 = vld [vmem:[#allocation5 + $0x58] sm:$0xff]
      %v103 = vld [vmem:[#allocation5 + $0x60] sm:$0xff]
      %v104 = vld [vmem:[#allocation5 + $0x68] sm:$0xff]
      %v105 = vld [vmem:[#allocation5 + $0x70] sm:$0xff]
      %v106 = vld [vmem:[#allocation5 + $0x78] sm:$0xff]
      %v107 = vld [vmem:[#allocation5 + $0x80] sm:$0xff]
      %v108 = vld [vmem:[#allocation5 + $0x88] sm:$0xff]
      %v109 = vld [vmem:[#allocation5 + $0x90] sm:$0xff]
      %v110 = vld [vmem:[#allocation5 + $0x98] sm:$0xff]
      %v111 = vld [vmem:[#allocation5 + $0xa0] sm:$0xff]
      %v112 = vld [vmem:[#allocation5 + $0xa8] sm:$0xff]
      %v113 = vld [vmem:[#allocation5 + $0xb0] sm:$0xff]
      %v114 = vld [vmem:[#allocation5 + $0xb8] sm:$0xff]
      %v115 = vld [vmem:[#allocation5 + $0xc0] sm:$0xff]
      %v116 = vld [vmem:[#allocation5 + $0xc8] sm:$0xff]
      %v117 = vld [vmem:[#allocation5 + $0xd0] sm:$0xff]
      %v118 = vld [vmem:[#allocation5 + $0xd8] sm:$0xff]
      %v119 = vld [vmem:[#allocation5 + $0xe0] sm:$0xff]
      %v120 = vld [vmem:[#allocation5 + $0xe8] sm:$0xff]
      %v121 = vld [vmem:[#allocation5 + $0xf0] sm:$0xff]
      %v122 = vld [vmem:[#allocation5 + $0xf8] sm:$0xff]
      %v123 = vld [vmem:[#allocation5 + $0x100] sm:$0xff]
      %v124 = vld [vmem:[#allocation5 + $0x108] sm:$0xff]
      %v125 = vld [vmem:[#allocation5 + $0x110] sm:$0xff]
      %v126 = vld [vmem:[#allocation5 + $0x118] sm:$0xff]
      %v127 = vld [vmem:[#allocation5 + $0x120] sm:$0xff]
      %v128 = vld [vmem:[#allocation5 + $0x128] sm:$0xff]
      %v129 = vld [vmem:[#allocation5 + $0x130] sm:$0xff]
      %v130 = vld [vmem:[#allocation5 + $0x138] sm:$0xff]
      %v131 = vld [vmem:[#allocation5 + $0x140] sm:$0xff]
      %v132 = vld [vmem:[#allocation5 + $0x148] sm:$0xff]
      %v133 = vld [vmem:[#allocation5 + $0x150] sm:$0xff]
      %v134 = vld [vmem:[#allocation5 + $0x158] sm:$0xff]
      %v135 = vld [vmem:[#allocation5 + $0x160] sm:$0xff]
      %v136 = vld [vmem:[#allocation5 + $0x168] sm:$0xff]
      %v137 = vld [vmem:[#allocation5 + $0x170] sm:$0xff]
      %v138 = vld [vmem:[#allocation5 + $0x178] sm:$0xff]
      %v139 = vld [vmem:[%s3] sm:$0x7]
      %v141 = vlaneseq
      %v142 = vshrl.u32 %v141, 7
      %v143 = vsub.s32 0, %v142
      %v144 = vrot.slane %v139, %v143
      %v145 = vlaneseq
      %v146 = vshrl.u32 %v145, 7
      %v147 = vsub.s32 1, %v146
      %v148 = vrot.slane %v139, %v147
      %v149 = vlaneseq
      %v150 = vshrl.u32 %v149, 7
      %v151 = vsub.s32 2, %v150
      %v152 = vrot.slane %v139, %v151
      %156 = vmatprep.subr.mxu0 %v92
      %157 = vmatpush1.msra.mxu0 %v91
      %158 = vmatprep.subr.mxu0 %v95
      %159 = vmatpush1.msra.mxu0 %v94
      %160 = vmatprep.subr.mxu0 %v98
      %161 = vmatpush1.msra.mxu0 %v97
      %162 = vmatprep.subr.mxu0 %v101
      %163 = vmatpush1.msra.mxu0 %v100
      %164 = vmatprep.subr.mxu0 %v104
      %165 = vmatpush1.msra.mxu0 %v103
      %166 = vmatprep.subr.mxu0 %v107
      %167 = vmatpush1.msra.mxu0 %v106
      %168 = vmatprep.subr.mxu0 %v110
      %169 = vmatpush1.msra.mxu0 %v109
      %170 = vmatprep.subr.mxu0 %v113
      %171 = vmatpush1.msra.mxu0 %v112
      %172 = vmatprep.subr.mxu0 %v116
      %173 = vmatpush1.msra.mxu0 %v115
      %174 = vmatprep.subr.mxu0 %v119
      %175 = vmatpush1.msra.mxu0 %v118
      %176 = vmatprep.subr.mxu0 %v122
      %177 = vmatpush1.msra.mxu0 %v121
      %178 = vmatprep.subr.mxu0 %v125
      %179 = vmatpush1.msra.mxu0 %v124
      %180 = vmatprep.subr.mxu0 %v128
      %181 = vmatpush1.msra.mxu0 %v127
      %182 = vmatprep.subr.mxu0 %v131
      %183 = vmatpush1.msra.mxu0 %v130
      %184 = vmatprep.subr.mxu0 %v134
      %185 = vmatpush1.msra.mxu0 %v133
      %186 = vmatprep.subr.mxu0 %v137
      %187 = vmatpush1.msra.mxu0 %v136
      %188 = vmatprep.subr.mxu0 0.0
      %189 = vmatpush1.msra.mxu0 0.0
      %190 = vmatprep.subr.mxu0 0.0
      %191 = vmatpush1.msra.mxu0 0.0
      %192 = vmatprep.subr.mxu0 0.0
      %193 = vmatpush1.msra.mxu0 0.0
      %194 = vmatprep.subr.mxu0 0.0
      %195 = vmatpush1.msra.mxu0 0.0
      %196 = vmatprep.subr.mxu0 0.0
      %197 = vmatpush1.msra.mxu0 0.0
      %198 = vmatprep.subr.mxu0 0.0
      %199 = vmatpush1.msra.mxu0 0.0
      %200 = vmatprep.subr.mxu0 0.0
      %201 = vmatpush1.msra.mxu0 0.0
      %202 = vmatprep.subr.mxu0 0.0
      %203 = vmatpush1.msra.mxu0 0.0
      %204 = vmatprep.subr.mxu0 0.0
      %205 = vmatpush1.msra.mxu0 0.0
      %206 = vmatprep.subr.mxu0 0.0
      %207 = vmatpush1.msra.mxu0 0.0
      %208 = vmatprep.subr.mxu0 0.0
      %209 = vmatpush1.msra.mxu0 0.0
      %210 = vmatprep.subr.mxu0 0.0
      %211 = vmatpush1.msra.mxu0 0.0
      %212 = vmatprep.subr.mxu0 0.0
      %213 = vmatpush1.msra.mxu0 0.0
      %214 = vmatprep.subr.mxu0 0.0
      %215 = vmatpush1.msra.mxu0 0.0
      %216 = vmatprep.subr.mxu0 0.0
      %217 = vmatpush1.msra.mxu0 0.0
      %218 = vmatprep.subr.mxu0 0.0
      %219 = vmatpush1.msra.mxu0 0.0
      %220 = vmatprep.mubr.f32.mxu0 0.0
      %221 = vmatmul.mubr.f32.gmra.mrb[0].mxu0 %v88
      %v222 = vpop.f32.mrb[0].mxu0
      %v223 = vadd.f32 %v144, %v222
      %v224 = vpop.f32.mrb[0].mxu0
      %v225 = vadd.f32 %v148, %v224
      %226 = vdwg.mxu0
      %227 = vmatprep.subr.mxu0 0.0
      %228 = vmatpush1.msra.mxu0 %v93
      %229 = vmatprep.subr.mxu0 0.0
      %230 = vmatpush1.msra.mxu0 %v96
      %231 = vmatprep.subr.mxu0 0.0
      %232 = vmatpush1.msra.mxu0 %v99
      %233 = vmatprep.subr.mxu0 0.0
      %234 = vmatpush1.msra.mxu0 %v102
      %235 = vmatprep.subr.mxu0 0.0
      %236 = vmatpush1.msra.mxu0 %v105
      %237 = vmatprep.subr.mxu0 0.0
      %238 = vmatpush1.msra.mxu0 %v108
      %239 = vmatprep.subr.mxu0 0.0
      %240 = vmatpush1.msra.mxu0 %v111
      %241 = vmatprep.subr.mxu0 0.0
      %242 = vmatpush1.msra.mxu0 %v114
      %243 = vmatprep.subr.mxu0 0.0
      %244 = vmatpush1.msra.mxu0 %v117
      %245 = vmatprep.subr.mxu0 0.0
      %246 = vmatpush1.msra.mxu0 %v120
      %247 = vmatprep.subr.mxu0 0.0
      %248 = vmatpush1.msra.mxu0 %v123
      %249 = vmatprep.subr.mxu0 0.0
      %250 = vmatpush1.msra.mxu0 %v126
      %251 = vmatprep.subr.mxu0 0.0
      %252 = vmatpush1.msra.mxu0 %v129
      %253 = vmatprep.subr.mxu0 0.0
      %254 = vmatpush1.msra.mxu0 %v132
      %255 = vmatprep.subr.mxu0 0.0
      %256 = vmatpush1.msra.mxu0 %v135
      %257 = vmatprep.subr.mxu0 0.0
      %258 = vmatpush1.msra.mxu0 %v138
      %259 = vmatprep.subr.mxu0 0.0
      %260 = vmatpush1.msra.mxu0 0.0
      %261 = vmatprep.subr.mxu0 0.0
      %262 = vmatpush1.msra.mxu0 0.0
      %263 = vmatprep.subr.mxu0 0.0
      %264 = vmatpush1.msra.mxu0 0.0
      %265 = vmatprep.subr.mxu0 0.0
      %266 = vmatpush1.msra.mxu0 0.0
      %267 = vmatprep.subr.mxu0 0.0
      %268 = vmatpush1.msra.mxu0 0.0
      %269 = vmatprep.subr.mxu0 0.0
      %270 = vmatpush1.msra.mxu0 0.0
      %271 = vmatprep.subr.mxu0 0.0
      %272 = vmatpush1.msra.mxu0 0.0
      %273 = vmatprep.subr.mxu0 0.0
      %274 = vmatpush1.msra.mxu0 0.0
      %275 = vmatprep.subr.mxu0 0.0
      %276 = vmatpush1.msra.mxu0 0.0
      %277 = vmatprep.subr.mxu0 0.0
      %278 = vmatpush1.msra.mxu0 0.0
      %279 = vmatprep.subr.mxu0 0.0
      %280 = vmatpush1.msra.mxu0 0.0
      %281 = vmatprep.subr.mxu0 0.0
      %282 = vmatpush1.msra.mxu0 0.0
      %283 = vmatprep.subr.mxu0 0.0
      %284 = vmatpush1.msra.mxu0 0.0
      %285 = vmatprep.subr.mxu0 0.0
      %286 = vmatpush1.msra.mxu0 0.0
      %287 = vmatprep.subr.mxu0 0.0
      %288 = vmatpush1.msra.mxu0 0.0
      %289 = vmatprep.subr.mxu0 0.0
      %290 = vmatpush1.msra.mxu0 0.0
      %291 = vmatprep.mubr.f32.mxu0 0.0
      %292 = vmatmul.mubr.f32.gmra.mrb[0].mxu0 %v88
      %v293 = vpop.f32.mrb[0].mxu0
      %v294 = vadd.f32 %v152, %v293
      %v295 = vpop.f32.mrb[0].mxu0
      %296 = vdwg.mxu0
      %s297 = smul.u32 %s89, 2
      %s298 = smul.addr %s297, 8
      %s299 = scalar_lea.vmem [#allocation2], %s298
      %v300 = vld [vmem:[%s299] sm:$0xff]
      %v301 = vld [vmem:[%s299 + $0x8] sm:$0xff]
      %v302 = vadd.f32 %v300, %v223
      %v303 = vxor.u32 %v302, 2147483648
      %v304 = vmul.f32 %v303, 1.442695
      %v305 = vpow.pop %v304
      %v306 = vadd.f32 %v305, 1.0
      %v307 = vrcp.pop %v306
      %v308 = vmul.f32 1.0, %v307
      %v309 = vmul.f32 %v308, %v225
      %v310 = vadd.f32 %v301, %v309
      %v311 = vtanh.pop %v310
      %v312 = vsub.f32 1.0, %v308
      %314 = vrot.lane.b32.xlu0 %v311, 64
      %v315 = vpop.permute.xlu0 %314
      %v317 = vmul.f32 %v312, %v315
      %319 = vrot.lane.b32.xlu0 %v88, 64
      %v320 = vpop.permute.xlu0 %319
      %v322 = vmul.f32 %v308, %v320
      %v323 = vadd.f32 %v317, %v322
      %v324 = vld [vmem:[#allocation7] sm:$0xff]
      %v325 = vld [vmem:[#allocation7 + $0x8] sm:$0xff]
      %v326 = vld [vmem:[#allocation7 + $0x10] sm:$0xff]
      %v327 = vld [vmem:[#allocation7 + $0x18] sm:$0xff]
      %v328 = vld [vmem:[#allocation7 + $0x20] sm:$0xff]
      %v329 = vld [vmem:[#allocation7 + $0x28] sm:$0xff]
      %v330 = vld [vmem:[#allocation7 + $0x30] sm:$0xff]
      %v331 = vld [vmem:[#allocation7 + $0x38] sm:$0xff]
      %v332 = vld [vmem:[#allocation7 + $0x40] sm:$0xff]
      %v333 = vld [vmem:[#allocation7 + $0x48] sm:$0xff]
      %v334 = vld [vmem:[#allocation7 + $0x50] sm:$0xff]
      %v335 = vld [vmem:[#allocation7 + $0x58] sm:$0xff]
      %v336 = vld [vmem:[#allocation7 + $0x60] sm:$0xff]
      %v337 = vld [vmem:[#allocation7 + $0x68] sm:$0xff]
      %v338 = vld [vmem:[#allocation7 + $0x70] sm:$0xff]
      %v339 = vld [vmem:[#allocation7 + $0x78] sm:$0xff]
      %v340 = vld [vmem:[%s4] sm:$0x3]
      %v342 = vlaneseq
      %v343 = vshrl.u32 %v342, 7
      %v344 = vsub.s32 0, %v343
      %v345 = vrot.slane %v340, %v344
      %v346 = vlaneseq
      %v347 = vshrl.u32 %v346, 7
      %v348 = vsub.s32 1, %v347
      %v349 = vrot.slane %v340, %v348
      %353 = vrot.lane.b32.xlu0 %v323, 64
      %v354 = vpop.permute.xlu0 %353
      %vm355 = vcmask 523264
      %v356 = vsel %vm355, %v354, 0
      %358 = vmatprep.subr.mxu0 %v325
      %359 = vmatpush1.msra.mxu0 %v324
      %360 = vmatprep.subr.mxu0 %v327
      %361 = vmatpush1.msra.mxu0 %v326
      %362 = vmatprep.subr.mxu0 %v329
      %363 = vmatpush1.msra.mxu0 %v328
      %364 = vmatprep.subr.mxu0 %v331
      %365 = vmatpush1.msra.mxu0 %v330
      %366 = vmatprep.subr.mxu0 %v333
      %367 = vmatpush1.msra.mxu0 %v332
      %368 = vmatprep.subr.mxu0 %v335
      %369 = vmatpush1.msra.mxu0 %v334
      %370 = vmatprep.subr.mxu0 %v337
      %371 = vmatpush1.msra.mxu0 %v336
      %372 = vmatprep.subr.mxu0 %v339
      %373 = vmatpush1.msra.mxu0 %v338
      %374 = vmatprep.subr.mxu0 0.0
      %375 = vmatpush1.msra.mxu0 0.0
      %376 = vmatprep.subr.mxu0 0.0
      %377 = vmatpush1.msra.mxu0 0.0
      %378 = vmatprep.subr.mxu0 0.0
      %379 = vmatpush1.msra.mxu0 0.0
      %380 = vmatprep.subr.mxu0 0.0
      %381 = vmatpush1.msra.mxu0 0.0
      %382 = vmatprep.subr.mxu0 0.0
      %383 = vmatpush1.msra.mxu0 0.0
      %384 = vmatprep.subr.mxu0 0.0
      %385 = vmatpush1.msra.mxu0 0.0
      %386 = vmatprep.subr.mxu0 0.0
      %387 = vmatpush1.msra.mxu0 0.0
      %388 = vmatprep.subr.mxu0 0.0
      %389 = vmatpush1.msra.mxu0 0.0
      %390 = vmatprep.subr.mxu0 0.0
      %391 = vmatpush1.msra.mxu0 0.0
      %392 = vmatprep.subr.mxu0 0.0
      %393 = vmatpush1.msra.mxu0 0.0
      %394 = vmatprep.subr.mxu0 0.0
      %395 = vmatpush1.msra.mxu0 0.0
      %396 = vmatprep.subr.mxu0 0.0
      %397 = vmatpush1.msra.mxu0 0.0
      %398 = vmatprep.subr.mxu0 0.0
      %399 = vmatpush1.msra.mxu0 0.0
      %400 = vmatprep.subr.mxu0 0.0
      %401 = vmatpush1.msra.mxu0 0.0
      %402 = vmatprep.subr.mxu0 0.0
      %403 = vmatpush1.msra.mxu0 0.0
      %404 = vmatprep.subr.mxu0 0.0
      %405 = vmatpush1.msra.mxu0 0.0
      %406 = vmatprep.subr.mxu0 0.0
      %407 = vmatpush1.msra.mxu0 0.0
      %408 = vmatprep.subr.mxu0 0.0
      %409 = vmatpush1.msra.mxu0 0.0
      %410 = vmatprep.subr.mxu0 0.0
      %411 = vmatpush1.msra.mxu0 0.0
      %412 = vmatprep.subr.mxu0 0.0
      %413 = vmatpush1.msra.mxu0 0.0
      %414 = vmatprep.subr.mxu0 0.0
      %415 = vmatpush1.msra.mxu0 0.0
      %416 = vmatprep.subr.mxu0 0.0
      %417 = vmatpush1.msra.mxu0 0.0
      %418 = vmatprep.subr.mxu0 0.0
      %419 = vmatpush1.msra.mxu0 0.0
      %420 = vmatprep.subr.mxu0 0.0
      %421 = vmatpush1.msra.mxu0 0.0
      %422 = vmatprep.mubr.f32.mxu0 0.0
      %423 = vmatmul.mubr.f32.gmra.mrb[0].mxu0 %v356
      %v424 = vpop.f32.mrb[0].mxu0
      %v425 = vadd.f32 %v345, %v424
      %v426 = vpop.f32.mrb[0].mxu0
      %v427 = vadd.f32 %v349, %v426
      %428 = vdwg.mxu0
      %430 = vrot.lane.b32.xlu0 %v225, 64
      %v431 = vpop.permute.xlu0 %430
      %v433 = vadd.f32 %v425, %v431
      %v434 = vxor.u32 %v433, 2147483648
      %v435 = vmul.f32 %v434, 1.442695
      %v436 = vpow.pop %v435
      %v437 = vadd.f32 %v436, 1.0
      %v438 = vrcp.pop %v437
      %v439 = vmul.f32 1.0, %v438
      %441 = vrot.lane.b32.xlu0 %v294, 64
      %v442 = vpop.permute.xlu0 %441
      %v444 = vadd.f32 %v425, %v442
      %v445 = vxor.u32 %v444, 2147483648
      %v446 = vmul.f32 %v445, 1.442695
      %v447 = vpow.pop %v446
      %v448 = vadd.f32 %v447, 1.0
      %v449 = vrcp.pop %v448
      %v450 = vmul.f32 1.0, %v449
      %v451 = vmul.f32 %v439, %v442
      %v452 = vadd.f32 %v427, %v451
      %v453 = vtanh.pop %v452
      %v454 = vsub.f32 1.0, %v450
      %456 = vrot.lane.b32.xlu0 %v453, 64
      %v457 = vpop.permute.xlu0 %456
      %v459 = vmul.f32 %v454, %v457
      %v460 = vmul.f32 %v450, %v88
      %v461 = vadd.f32 %v459, %v460
      %v463 = vsel %vm355, %v354, %v461
      %464 = vmatprep.subr.mxu0 %v92
      %465 = vmatpush1.msra.mxu0 %v91
      %466 = vmatprep.subr.mxu0 %v95
      %467 = vmatpush1.msra.mxu0 %v94
      %468 = vmatprep.subr.mxu0 %v98
      %469 = vmatpush1.msra.mxu0 %v97
      %470 = vmatprep.subr.mxu0 %v101
      %471 = vmatpush1.msra.mxu0 %v100
      %472 = vmatprep.subr.mxu0 %v104
      %473 = vmatpush1.msra.mxu0 %v103
      %474 = vmatprep.subr.mxu0 %v107
      %475 = vmatpush1.msra.mxu0 %v106
      %476 = vmatprep.subr.mxu0 %v110
      %477 = vmatpush1.msra.mxu0 %v109
      %478 = vmatprep.subr.mxu0 %v113
      %479 = vmatpush1.msra.mxu0 %v112
      %480 = vmatprep.subr.mxu0 %v116
      %481 = vmatpush1.msra.mxu0 %v115
      %482 = vmatprep.subr.mxu0 %v119
      %483 = vmatpush1.msra.mxu0 %v118
      %484 = vmatprep.subr.mxu0 %v122
      %485 = vmatpush1.msra.mxu0 %v121
      %486 = vmatprep.subr.mxu0 %v125
      %487 = vmatpush1.msra.mxu0 %v124
      %488 = vmatprep.subr.mxu0 %v128
      %489 = vmatpush1.msra.mxu0 %v127
      %490 = vmatprep.subr.mxu0 %v131
      %491 = vmatpush1.msra.mxu0 %v130
      %492 = vmatprep.subr.mxu0 %v134
      %493 = vmatpush1.msra.mxu0 %v133
      %494 = vmatprep.subr.mxu0 %v137
      %495 = vmatpush1.msra.mxu0 %v136
      %496 = vmatprep.subr.mxu0 0.0
      %497 = vmatpush1.msra.mxu0 0.0
      %498 = vmatprep.subr.mxu0 0.0
      %499 = vmatpush1.msra.mxu0 0.0
      %500 = vmatprep.subr.mxu0 0.0
      %501 = vmatpush1.msra.mxu0 0.0
      %502 = vmatprep.subr.mxu0 0.0
      %503 = vmatpush1.msra.mxu0 0.0
      %504 = vmatprep.subr.mxu0 0.0
      %505 = vmatpush1.msra.mxu0 0.0
      %506 = vmatprep.subr.mxu0 0.0
      %507 = vmatpush1.msra.mxu0 0.0
      %508 = vmatprep.subr.mxu0 0.0
      %509 = vmatpush1.msra.mxu0 0.0
      %510 = vmatprep.subr.mxu0 0.0
      %511 = vmatpush1.msra.mxu0 0.0
      %512 = vmatprep.subr.mxu0 0.0
      %513 = vmatpush1.msra.mxu0 0.0
      %514 = vmatprep.subr.mxu0 0.0
      %515 = vmatpush1.msra.mxu0 0.0
      %516 = vmatprep.subr.mxu0 0.0
      %517 = vmatpush1.msra.mxu0 0.0
      %518 = vmatprep.subr.mxu0 0.0
      %519 = vmatpush1.msra.mxu0 0.0
      %520 = vmatprep.subr.mxu0 0.0
      %521 = vmatpush1.msra.mxu0 0.0
      %522 = vmatprep.subr.mxu0 0.0
      %523 = vmatpush1.msra.mxu0 0.0
      %524 = vmatprep.subr.mxu0 0.0
      %525 = vmatpush1.msra.mxu0 0.0
      %526 = vmatprep.subr.mxu0 0.0
      %527 = vmatpush1.msra.mxu0 0.0
      %528 = vmatprep.mubr.f32.mxu0 0.0
      %529 = vmatmul.mubr.f32.gmra.mrb[0].mxu0 %v463
      %v530 = vpop.f32.mrb[0].mxu0
      %v531 = vadd.f32 %v144, %v530
      %v532 = vpop.f32.mrb[0].mxu0
      %v533 = vadd.f32 %v148, %v532
      %534 = vdwg.mxu0
      %535 = vmatprep.subr.mxu0 0.0
      %536 = vmatpush1.msra.mxu0 %v93
      %537 = vmatprep.subr.mxu0 0.0
      %538 = vmatpush1.msra.mxu0 %v96
      %539 = vmatprep.subr.mxu0 0.0
      %540 = vmatpush1.msra.mxu0 %v99
      %541 = vmatprep.subr.mxu0 0.0
      %542 = vmatpush1.msra.mxu0 %v102
      %543 = vmatprep.subr.mxu0 0.0
      %544 = vmatpush1.msra.mxu0 %v105
      %545 = vmatprep.subr.mxu0 0.0
      %546 = vmatpush1.msra.mxu0 %v108
      %547 = vmatprep.subr.mxu0 0.0
      %548 = vmatpush1.msra.mxu0 %v111
      %549 = vmatprep.subr.mxu0 0.0
      %550 = vmatpush1.msra.mxu0 %v114
      %551 = vmatprep.subr.mxu0 0.0
      %552 = vmatpush1.msra.mxu0 %v117
      %553 = vmatprep.subr.mxu0 0.0
      %554 = vmatpush1.msra.mxu0 %v120
      %555 = vmatprep.subr.mxu0 0.0
      %556 = vmatpush1.msra.mxu0 %v123
      %557 = vmatprep.subr.mxu0 0.0
      %558 = vmatpush1.msra.mxu0 %v126
      %559 = vmatprep.subr.mxu0 0.0
      %560 = vmatpush1.msra.mxu0 %v129
      %561 = vmatprep.subr.mxu0 0.0
      %562 = vmatpush1.msra.mxu0 %v132
      %563 = vmatprep.subr.mxu0 0.0
      %564 = vmatpush1.msra.mxu0 %v135
      %565 = vmatprep.subr.mxu0 0.0
      %566 = vmatpush1.msra.mxu0 %v138
      %567 = vmatprep.subr.mxu0 0.0
      %568 = vmatpush1.msra.mxu0 0.0
      %569 = vmatprep.subr.mxu0 0.0
      %570 = vmatpush1.msra.mxu0 0.0
      %571 = vmatprep.subr.mxu0 0.0
      %572 = vmatpush1.msra.mxu0 0.0
      %573 = vmatprep.subr.mxu0 0.0
      %574 = vmatpush1.msra.mxu0 0.0
      %575 = vmatprep.subr.mxu0 0.0
      %576 = vmatpush1.msra.mxu0 0.0
      %577 = vmatprep.subr.mxu0 0.0
      %578 = vmatpush1.msra.mxu0 0.0
      %579 = vmatprep.subr.mxu0 0.0
      %580 = vmatpush1.msra.mxu0 0.0
      %581 = vmatprep.subr.mxu0 0.0
      %582 = vmatpush1.msra.mxu0 0.0
      %583 = vmatprep.subr.mxu0 0.0
      %584 = vmatpush1.msra.mxu0 0.0
      %585 = vmatprep.subr.mxu0 0.0
      %586 = vmatpush1.msra.mxu0 0.0
      %587 = vmatprep.subr.mxu0 0.0
      %588 = vmatpush1.msra.mxu0 0.0
      %589 = vmatprep.subr.mxu0 0.0
      %590 = vmatpush1.msra.mxu0 0.0
      %591 = vmatprep.subr.mxu0 0.0
      %592 = vmatpush1.msra.mxu0 0.0
      %593 = vmatprep.subr.mxu0 0.0
      %594 = vmatpush1.msra.mxu0 0.0
      %595 = vmatprep.subr.mxu0 0.0
      %596 = vmatpush1.msra.mxu0 0.0
      %597 = vmatprep.subr.mxu0 0.0
      %598 = vmatpush1.msra.mxu0 0.0
      %599 = vmatprep.mubr.f32.mxu0 0.0
      %600 = vmatmul.mubr.f32.gmra.mrb[0].mxu0 %v463
      %v601 = vpop.f32.mrb[0].mxu0
      %v602 = vadd.f32 %v152, %v601
      %v603 = vpop.f32.mrb[0].mxu0
      %604 = vdwg.mxu0
      %s605 = smul.u32 %s90, 2
      %s606 = smul.addr %s605, 8
      %s607 = scalar_lea.vmem [#allocation2], %s606
      %v608 = vld [vmem:[%s607] sm:$0xff]
      %v609 = vld [vmem:[%s607 + $0x8] sm:$0xff]
      %v610 = vadd.f32 %v608, %v531
      %v611 = vxor.u32 %v610, 2147483648
      %v612 = vmul.f32 %v611, 1.442695
      %v613 = vpow.pop %v612
      %v614 = vadd.f32 %v613, 1.0
      %v615 = vrcp.pop %v614
      %v616 = vmul.f32 1.0, %v615
      %v617 = vmul.f32 %v616, %v533
      %v618 = vadd.f32 %v609, %v617
      %v619 = vtanh.pop %v618
      %v620 = vsub.f32 1.0, %v616
      %622 = vrot.lane.b32.xlu0 %v619, 64
      %v623 = vpop.permute.xlu0 %622
      %v625 = vmul.f32 %v620, %v623
      %627 = vrot.lane.b32.xlu0 %v463, 64
      %v628 = vpop.permute.xlu0 %627
      %v630 = vmul.f32 %v616, %v628
      %v631 = vadd.f32 %v625, %v630
      %633 = vrot.lane.b32.xlu0 %v631, 64
      %v634 = vpop.permute.xlu0 %633
      %v635 = vsel %vm355, %v634, 0
      %637 = vmatprep.subr.mxu0 %v325
      %638 = vmatpush1.msra.mxu0 %v324
      %639 = vmatprep.subr.mxu0 %v327
      %640 = vmatpush1.msra.mxu0 %v326
      %641 = vmatprep.subr.mxu0 %v329
      %642 = vmatpush1.msra.mxu0 %v328
      %643 = vmatprep.subr.mxu0 %v331
      %644 = vmatpush1.msra.mxu0 %v330
      %645 = vmatprep.subr.mxu0 %v333
      %646 = vmatpush1.msra.mxu0 %v332
      %647 = vmatprep.subr.mxu0 %v335
      %648 = vmatpush1.msra.mxu0 %v334
      %649 = vmatprep.subr.mxu0 %v337
      %650 = vmatpush1.msra.mxu0 %v336
      %651 = vmatprep.subr.mxu0 %v339
      %652 = vmatpush1.msra.mxu0 %v338
      %653 = vmatprep.subr.mxu0 0.0
      %654 = vmatpush1.msra.mxu0 0.0
      %655 = vmatprep.subr.mxu0 0.0
      %656 = vmatpush1.msra.mxu0 0.0
      %657 = vmatprep.subr.mxu0 0.0
      %658 = vmatpush1.msra.mxu0 0.0
      %659 = vmatprep.subr.mxu0 0.0
      %660 = vmatpush1.msra.mxu0 0.0
      %661 = vmatprep.subr.mxu0 0.0
      %662 = vmatpush1.msra.mxu0 0.0
      %663 = vmatprep.subr.mxu0 0.0
      %664 = vmatpush1.msra.mxu0 0.0
      %665 = vmatprep.subr.mxu0 0.0
      %666 = vmatpush1.msra.mxu0 0.0
      %667 = vmatprep.subr.mxu0 0.0
      %668 = vmatpush1.msra.mxu0 0.0
      %669 = vmatprep.subr.mxu0 0.0
      %670 = vmatpush1.msra.mxu0 0.0
      %671 = vmatprep.subr.mxu0 0.0
      %672 = vmatpush1.msra.mxu0 0.0
      %673 = vmatprep.subr.mxu0 0.0
      %674 = vmatpush1.msra.mxu0 0.0
      %675 = vmatprep.subr.mxu0 0.0
      %676 = vmatpush1.msra.mxu0 0.0
      %677 = vmatprep.subr.mxu0 0.0
      %678 = vmatpush1.msra.mxu0 0.0
      %679 = vmatprep.subr.mxu0 0.0
      %680 = vmatpush1.msra.mxu0 0.0
      %681 = vmatprep.subr.mxu0 0.0
      %682 = vmatpush1.msra.mxu0 0.0
      %683 = vmatprep.subr.mxu0 0.0
      %684 = vmatpush1.msra.mxu0 0.0
      %685 = vmatprep.subr.mxu0 0.0
      %686 = vmatpush1.msra.mxu0 0.0
      %687 = vmatprep.subr.mxu0 0.0
      %688 = vmatpush1.msra.mxu0 0.0
      %689 = vmatprep.subr.mxu0 0.0
      %690 = vmatpush1.msra.mxu0 0.0
      %691 = vmatprep.subr.mxu0 0.0
      %692 = vmatpush1.msra.mxu0 0.0
      %693 = vmatprep.subr.mxu0 0.0
      %694 = vmatpush1.msra.mxu0 0.0
      %695 = vmatprep.subr.mxu0 0.0
      %696 = vmatpush1.msra.mxu0 0.0
      %697 = vmatprep.subr.mxu0 0.0
      %698 = vmatpush1.msra.mxu0 0.0
      %699 = vmatprep.subr.mxu0 0.0
      %700 = vmatpush1.msra.mxu0 0.0
      %701 = vmatprep.mubr.f32.mxu0 0.0
      %702 = vmatmul.mubr.f32.gmra.mrb[0].mxu0 %v635
      %v703 = vpop.f32.mrb[0].mxu0
      %v704 = vadd.f32 %v345, %v703
      %v705 = vpop.f32.mrb[0].mxu0
      %v706 = vadd.f32 %v349, %v705
      %707 = vdwg.mxu0
      %709 = vrot.lane.b32.xlu0 %v533, 64
      %v710 = vpop.permute.xlu0 %709
      %v712 = vadd.f32 %v704, %v710
      %v713 = vxor.u32 %v712, 2147483648
      %v714 = vmul.f32 %v713, 1.442695
      %v715 = vpow.pop %v714
      %v716 = vadd.f32 %v715, 1.0
      %v717 = vrcp.pop %v716
      %v718 = vmul.f32 1.0, %v717
      %720 = vrot.lane.b32.xlu0 %v602, 64
      %v721 = vpop.permute.xlu0 %720
      %v723 = vadd.f32 %v704, %v721
      %v724 = vxor.u32 %v723, 2147483648
      %v725 = vmul.f32 %v724, 1.442695
      %v726 = vpow.pop %v725
      %v727 = vadd.f32 %v726, 1.0
      %v728 = vrcp.pop %v727
      %v729 = vmul.f32 1.0, %v728
      %v730 = vmul.f32 %v718, %v721
      %v731 = vadd.f32 %v706, %v730
      %v732 = vtanh.pop %v731
      %v733 = vsub.f32 1.0, %v729
      %735 = vrot.lane.b32.xlu0 %v732, 64
      %v736 = vpop.permute.xlu0 %735
      %v738 = vmul.f32 %v733, %v736
      %v739 = vmul.f32 %v729, %v463
      %v740 = vadd.f32 %v738, %v739
      %v742 = vsel %vm355, %v634, %v740
    $region50: #{tpu_custom_call.1} parent=1 // loop_footer
      %s87 = sadd.s32 1, %s83
    $region51: #{tpu_custom_call.1} parent=1 // loop_footer_branch
      %82 = sbr.rel target = $region47
    $region52: #{tpu_custom_call.1} parent=1 // loop_exit
      _
    %v743 = vld [vmem:[#allocation8] sm:$0xff]
    %v744 = vld [vmem:[#allocation8 + $0x8] sm:$0xff]
    %v745 = vld [vmem:[#allocation8 + $0x10] sm:$0xff]
    %v746 = vld [vmem:[#allocation8 + $0x18] sm:$0xff]
    %v747 = vld [vmem:[#allocation8 + $0x20] sm:$0xff]
    %v748 = vld [vmem:[#allocation8 + $0x28] sm:$0xff]
    %v749 = vld [vmem:[#allocation8 + $0x30] sm:$0xff]
    %v750 = vld [vmem:[#allocation8 + $0x38] sm:$0xff]
    %v751 = vld [vmem:[#allocation8 + $0x40] sm:$0xff]
    %v752 = vld [vmem:[#allocation8 + $0x48] sm:$0xff]
    %v753 = vld [vmem:[#allocation8 + $0x50] sm:$0xff]
    %v754 = vld [vmem:[#allocation8 + $0x58] sm:$0xff]
    %v755 = vld [vmem:[#allocation8 + $0x60] sm:$0xff]
    %v756 = vld [vmem:[#allocation8 + $0x68] sm:$0xff]
    %v757 = vld [vmem:[#allocation8 + $0x70] sm:$0xff]
    %v758 = vld [vmem:[#allocation8 + $0x78] sm:$0xff]
    %v759 = vld [vmem:[%s6] sm:$0x1]
    %v761 = vlaneseq
    %v762 = vshrl.u32 %v761, 7
    %v763 = vsub.s32 0, %v762
    %v764 = vrot.slane %v759, %v763
    %766 = vmatprep.subr.mxu0 0.0
    %767 = vmatpush1.msra.mxu0 %v743
    %768 = vmatprep.subr.mxu0 0.0
    %769 = vmatpush1.msra.mxu0 %v744
    %770 = vmatprep.subr.mxu0 0.0
    %771 = vmatpush1.msra.mxu0 %v745
    %772 = vmatprep.subr.mxu0 0.0
    %773 = vmatpush1.msra.mxu0 %v746
    %774 = vmatprep.subr.mxu0 0.0
    %775 = vmatpush1.msra.mxu0 %v747
    %776 = vmatprep.subr.mxu0 0.0
    %777 = vmatpush1.msra.mxu0 %v748
    %778 = vmatprep.subr.mxu0 0.0
    %779 = vmatpush1.msra.mxu0 %v749
    %780 = vmatprep.subr.mxu0 0.0
    %781 = vmatpush1.msra.mxu0 %v750
    %782 = vmatprep.subr.mxu0 0.0
    %783 = vmatpush1.msra.mxu0 %v751
    %784 = vmatprep.subr.mxu0 0.0
    %785 = vmatpush1.msra.mxu0 %v752
    %786 = vmatprep.subr.mxu0 0.0
    %787 = vmatpush1.msra.mxu0 %v753
    %788 = vmatprep.subr.mxu0 0.0
    %789 = vmatpush1.msra.mxu0 %v754
    %790 = vmatprep.subr.mxu0 0.0
    %791 = vmatpush1.msra.mxu0 %v755
    %792 = vmatprep.subr.mxu0 0.0
    %793 = vmatpush1.msra.mxu0 %v756
    %794 = vmatprep.subr.mxu0 0.0
    %795 = vmatpush1.msra.mxu0 %v757
    %796 = vmatprep.subr.mxu0 0.0
    %797 = vmatpush1.msra.mxu0 %v758
    %798 = vmatprep.subr.mxu0 0.0
    %799 = vmatpush1.msra.mxu0 0.0
    %800 = vmatprep.subr.mxu0 0.0
    %801 = vmatpush1.msra.mxu0 0.0
    %802 = vmatprep.subr.mxu0 0.0
    %803 = vmatpush1.msra.mxu0 0.0
    %804 = vmatprep.subr.mxu0 0.0
    %805 = vmatpush1.msra.mxu0 0.0
    %806 = vmatprep.subr.mxu0 0.0
    %807 = vmatpush1.msra.mxu0 0.0
    %808 = vmatprep.subr.mxu0 0.0
    %809 = vmatpush1.msra.mxu0 0.0
    %810 = vmatprep.subr.mxu0 0.0
    %811 = vmatpush1.msra.mxu0 0.0
    %812 = vmatprep.subr.mxu0 0.0
    %813 = vmatpush1.msra.mxu0 0.0
    %814 = vmatprep.subr.mxu0 0.0
    %815 = vmatpush1.msra.mxu0 0.0
    %816 = vmatprep.subr.mxu0 0.0
    %817 = vmatpush1.msra.mxu0 0.0
    %818 = vmatprep.subr.mxu0 0.0
    %819 = vmatpush1.msra.mxu0 0.0
    %820 = vmatprep.subr.mxu0 0.0
    %821 = vmatpush1.msra.mxu0 0.0
    %822 = vmatprep.subr.mxu0 0.0
    %823 = vmatpush1.msra.mxu0 0.0
    %824 = vmatprep.subr.mxu0 0.0
    %825 = vmatpush1.msra.mxu0 0.0
    %826 = vmatprep.subr.mxu0 0.0
    %827 = vmatpush1.msra.mxu0 0.0
    %828 = vmatprep.subr.mxu0 0.0
    %829 = vmatpush1.msra.mxu0 0.0
    %830 = vmatprep.mubr.f32.mxu0 0.0
    %831 = vmatmul.mubr.f32.gmra.mrb[0].mxu0 %v88
    %v832 = vpop.f32.mrb[0].mxu0
    %v833 = vadd.f32 %v764, %v832
    %v834 = vpop.f32.mrb[0].mxu0
    %835 = vdwg.mxu0
    %836 = vst [vmem:[#allocation10] sm:$0xff] %v833
    // Predicated region
    $region53: #{tpu_custom_call.1} parent=1 // pred_check
      _
    $region54: #{tpu_custom_call.1} parent=1 // pred_check_branch
      %838 = sbr.rel (0) target = $region56
    $region55: #{tpu_custom_call.1} parent=1 // pred_region
      %s840 = ssub.s32 128, 128
      %841 = vsyncadd [#allocation4], %s840
      %s843 = sshll.u32 [#allocation10], 4
      %s844 = int_to_ptr.vmem [resolvable:$true] %s843
      %846 = dma.vmem_to_hbm [thread:$0]  %s844, 128, %s7, [#allocation4]
    $region56: #{tpu_custom_call.1} parent=1 // pred_fallthru
      _
    // Predicated region
    $region57: #{tpu_custom_call.1} parent=1 // pred_check
      _
    $region58: #{tpu_custom_call.1} parent=1 // pred_check_branch
      %848 = sbr.rel (0) target = $region60
    $region59: #{tpu_custom_call.1} parent=1 // pred_region
      %849 = dma.done [#allocation4], 128
    $region60: #{tpu_custom_call.1} parent=1 // pred_fallthru
      _
    %850 = vsyncpa [#allocation3], 1
    %851 = vsyncpa [#allocation6], 1
    %852 = vsyncpa [#allocation9], 1
    %853 = vsyncpa [#allocation4], 1

</llo_original>
